<compile_context>
chip_gen: v6e
topology: v6e:2x2x1
jax: 0.10.0
libtpu: 0.0.40
codegen_flags: <defaults>
</compile_context>

<pallas_src>
import jax
import jax.numpy as jnp
from jax import lax
from jax.experimental import pallas as pl
from jax.experimental.pallas import tpu as pltpu


def _inner_product_decoder_kernel(z_row_ref, z_col_ref, out_ref):
    """One (TM, TN) tile of sigmoid(z @ z^T).

    z_row_ref : [TM, D]  rows i*TM : (i+1)*TM of z
    z_col_ref : [TN, D]  rows j*TN : (j+1)*TN of z (acts as columns of z^T)
    out_ref   : [TM, TN]
    """
    # NT matmul on the MXU: contract the last (feature) dim of both operands.
    logits = lax.dot_general(
        z_row_ref[...],
        z_col_ref[...],
        dimension_numbers=(((1,), (1,)), ((), ())),
        preferred_element_type=jnp.float32,
    )
    out_ref[...] = jax.nn.sigmoid(logits).astype(out_ref.dtype)


def _round_up(x, m):
    return ((x + m - 1) // m) * m


def inner_product_decoder_forward(z, *, tile=128):
    """sigmoid(z @ z.T) via a tiled, pipelined Pallas kernel.

    z       : [N, D] float32 latent node embeddings
    returns : [N, N] float32 reconstructed (dense) adjacency
    """
    z = jnp.asarray(z, jnp.float32)
    n, d = z.shape

    # Pad the node dimension to a multiple of the tile so every block is
    # (tile, tile) and lane-dense (128).  Zero padding -> padded logits are 0,
    # and the padded region is sliced away below.
    n_pad = _round_up(n, tile)
    if n_pad != n:
        z_p = jnp.pad(z, ((0, n_pad - n), (0, 0)))
    else:
        z_p = z

    num_tiles = n_pad // tile

    cost = pl.CostEstimate(
        flops=2 * n_pad * n_pad * d,
        transcendentals=n_pad * n_pad,              # one exp per output element
        bytes_accessed=(2 * n_pad * d + n_pad * n_pad) * 4,
    )

    out_padded = pl.pallas_call(
        _inner_product_decoder_kernel,
        out_shape=jax.ShapeDtypeStruct((n_pad, n_pad), jnp.float32),
        grid=(num_tiles, num_tiles),
        in_specs=[
            # Row slab of z for output row-tile i (re-used across the j sweep).
            pl.BlockSpec((tile, d), lambda i, j: (i, 0)),
            # Row slab of z acting as the "columns" (z^T) for output col-tile j.
            pl.BlockSpec((tile, d), lambda i, j: (j, 0)),
        ],
        out_specs=pl.BlockSpec((tile, tile), lambda i, j: (i, j)),
        compiler_params=pltpu.CompilerParams(
            dimension_semantics=("parallel", "parallel"),
        ),
        cost_estimate=cost,
    )(z_p, z_p)

    if n_pad != n:
        return out_padded[:n, :n]
    return out_padded


if __name__ == "__main__":
    # Small deterministic example: N nodes with D-dim latent embeddings.
    N = 256
    D = 32

    key = jax.random.PRNGKey(0)
    z = jax.random.normal(key, (N, D), dtype=jnp.float32)

    adj_reconstructed = inner_product_decoder_forward(z)
    adj_reconstructed = jax.block_until_ready(adj_reconstructed)

    # Pure-JAX reference (same math as torch.sigmoid(z @ z.t())).
    ref = jax.nn.sigmoid(z @ z.T)

    assert adj_reconstructed.shape == (N, N)
    assert jnp.allclose(adj_reconstructed, ref, atol=1e-5, rtol=1e-5)

    print("KERNEL_OK")
</pallas_src>

<mosaic_0001>
module attributes {stable_mosaic.version = 11 : i64} {
  func.func @_inner_product_decoder_kernel(%arg0: i32, %arg1: i32, %arg2: memref<128x32xf32, #tpu.memory_space<vmem>>, %arg3: memref<128x32xf32, #tpu.memory_space<vmem>>, %arg4: memref<128x128xf32, #tpu.memory_space<vmem>>) attributes {dimension_semantics = [#tpu.dimension_semantics<parallel>, #tpu.dimension_semantics<parallel>], iteration_bounds = array<i64: 2, 2>, scalar_prefetch = 0 : i64, scratch_operands = 0 : i64, tpu.core_type = #tpu.core_type<tc>, window_params = [{transform_indices = @transform_0, window_bounds = array<i64: 128, 32>}, {transform_indices = @transform_1, window_bounds = array<i64: 128, 32>}, {transform_indices = @transform_2, window_bounds = array<i64: 128, 128>}]} {
    %c0 = arith.constant 0 : index
    %c0_0 = arith.constant 0 : index
    %0 = vector.load %arg2[%c0, %c0_0] : memref<128x32xf32, #tpu.memory_space<vmem>>, vector<128x32xf32>
    %c0_1 = arith.constant 0 : index
    %c0_2 = arith.constant 0 : index
    %1 = vector.load %arg3[%c0_1, %c0_2] : memref<128x32xf32, #tpu.memory_space<vmem>>, vector<128x32xf32>
    %cst = arith.constant dense<0.000000e+00> : vector<128x128xf32>
    %2 = tpu.matmul %0, %1, %cst {dimension_numbers = #tpu.dot_dimension_numbers<[1], [1], [0], [0], [0, 0, 1, 0], [], []>} : vector<128x32xf32>, vector<128x32xf32>, vector<128x128xf32> -> vector<128x128xf32>
    %3 = arith.negf %2 : vector<128x128xf32>
    %4 = math.exp %3 : vector<128x128xf32>
    %cst_3 = arith.constant 1.000000e+00 : f32
    %5 = vector.broadcast %cst_3 : f32 to vector<128x128xf32>
    %6 = arith.addf %5, %4 : vector<128x128xf32>
    %7 = arith.divf %5, %6 : vector<128x128xf32>
    %c0_4 = arith.constant 0 : index
    %c0_5 = arith.constant 0 : index
    %8 = vector.load %arg4[%c0_4, %c0_5] : memref<128x128xf32, #tpu.memory_space<vmem>>, vector<128x128xf32>
    tpu.vector_store %arg4[%c0_4, %c0_5], %7 {strides = array<i32>} : memref<128x128xf32, #tpu.memory_space<vmem>>, vector<128x128xf32>,
    return
  }
  func.func @transform_0(%arg0: i32, %arg1: i32) -> (i32, i32) {
    %c0_i32 = arith.constant 0 : i32
    %c0_i32_0 = arith.constant 0 : i32
    return %arg0, %c0_i32 : i32, i32
  }
  func.func @transform_1(%arg0: i32, %arg1: i32) -> (i32, i32) {
    %c0_i32 = arith.constant 0 : i32
    %c0_i32_0 = arith.constant 0 : i32
    return %arg1, %c0_i32 : i32, i32
  }
  func.func @transform_2(%arg0: i32, %arg1: i32) -> (i32, i32) {
    %c0_i32 = arith.constant 0 : i32
    return %arg0, %arg1 : i32, i32
  }
}

</mosaic_0001>

<llo_original>
// kernel: tpu_custom_call.1
$region0: #{tpu_custom_call.1}
  #allocation0 [shape = 'u32[]', space=smem, size = 0x4, offset = 0x4, fixed_abs, tag = 'smem constant byte address 0x4 - core index']
  #allocation1 [shape = 'u32[144,128]{1,0:T(1,128)}', space=vmem, size = 0x12000, scoped, tag = 'internal scratch']
  %s0 = inlined_call_operand.vmem [shape: f32[256,32], index: 0, kind: input, shape index: {}]
  %s1 = inlined_call_operand.vmem [shape: f32[256,32], index: 1, kind: input, shape index: {}]
  %s2 = inlined_call_operand.hbm [shape: f32[256,256], index: 2, kind: output, shape index: {}]
  %s3 = sld [smem:[#allocation0]]
  $region41: #{tpu_custom_call.1} parent=0
    _
  %s5 = ssub.s32 1, %s3
  %s6 = scalar_select 0, %s5, %s3
  $region1: #{tpu_custom_call.1} parent=0
    #allocation2 [shape = 'u8[131072]{0}', space=vmem, size = 0x20000, scoped, tag = 'output window, operand 0']
    #allocation3 [shape = 's32[2]{0}', space=sflag, size = 0x8, scoped, tag = 'scoped memory for tpu_custom_call.1']
    %7 = vsyncpa [#allocation3], 0
    %s8 = scalar_lea.sflag [#allocation3], 1
    %9 = vsyncpa %s8, 0
    loop: start=0, step=1, limit=6
    $region2: #{tpu_custom_call.1} parent=1 // loop_pre_header
      _
    $region3: #{tpu_custom_call.1} parent=1 // loop_header
      %s11 = sphi 0, %s15
      %p12 = scmp.ge.s32.totalorder %s11, 6
      %s18 = sphi 0, %s30
      %s19 = sphi 0, %s26
      %s20 = sphi 0, %s18
      %s21 = sphi 0, %s19
      %s22 = sphi 0, %s20
      %s23 = sphi 0, %s21
      %s33 = sphi 0, %s35
      %s36 = sphi 0, %s33
      %s37 = sphi 0, %s36
      %s53 = sphi 0, %s37
      %s59 = sphi 0, %s61
      %s62 = sphi 0, %s59
      %s63 = sphi 0, %s62
      %s79 = sphi 0, %s63
      %s87 = sphi 0, %s89
      %s90 = sphi 0, %s87
      %s91 = sphi 0, %s90
      %s107 = sphi 0, %s91
    $region4: #{tpu_custom_call.1} parent=1 // loop_header_branch
      %14 = sbr.rel (%p12) target = $region8
    $region5: #{tpu_custom_call.1} parent=1 // loop_body
      %s16 = ssub.s32 %s11, 1
      %s17 = ssub.s32 %s11, 2
      %s24 = sadd.s32 1, %s19
      %p25 = scmp.ge.s32.totalorder %s24, 2
      %s26 = scalar_select %p25, 0, %s24
      %s27 = sadd.s32 1, %s18
      %s28 = scalar_select %p25, %s27, %s18
      %p29 = scmp.ge.s32.totalorder %s28, 2
      %s30 = scalar_select %p29, 0, %s28
      %s31 = ssub.s32 %s18, %s30
      %p32 = scmp.eq.s32.totalorder %s31, 0
      %s34 = sadd.s32 %s33, 1
      %s35 = scalar_select %p32, %s33, %s34
      %p38 = pneg %p32
      %p39 = scmp.eq.s32.totalorder %s11, 3
      %p40 = por %p38, %p39
      %p41 = scmp.ne.s32.totalorder %s33, %s36
      %p42 = scmp.eq.s32.totalorder %s11, 0
      %p43 = por %p41, %p42
      %p44 = scmp.ne.s32.totalorder %s33, %s36
      %p45 = scmp.eq.s32.totalorder %s16, 3
      %p46 = por %p44, %p45
      %p47 = scmp.ne.s32.totalorder %s36, %s37
      %p48 = scmp.eq.s32.totalorder %s16, 0
      %p49 = por %p47, %p48
      %p50 = scmp.ne.s32.totalorder %s36, %s37
      %p51 = scmp.eq.s32.totalorder %s17, 3
      %p52 = por %p50, %p51
      %p54 = scmp.ne.s32.totalorder %s37, %s53
      %p55 = scmp.eq.s32.totalorder %s17, 0
      %p56 = por %p54, %p55
      %s57 = ssub.s32 %s19, %s26
      %p58 = scmp.eq.s32.totalorder %s57, 0
      %s60 = sadd.s32 %s59, 1
      %s61 = scalar_select %p58, %s59, %s60
      %p64 = pneg %p58
      %p65 = scmp.eq.s32.totalorder %s11, 3
      %p66 = por %p64, %p65
      %p67 = scmp.ne.s32.totalorder %s59, %s62
      %p68 = scmp.eq.s32.totalorder %s11, 0
      %p69 = por %p67, %p68
      %p70 = scmp.ne.s32.totalorder %s59, %s62
      %p71 = scmp.eq.s32.totalorder %s16, 3
      %p72 = por %p70, %p71
      %p73 = scmp.ne.s32.totalorder %s62, %s63
      %p74 = scmp.eq.s32.totalorder %s16, 0
      %p75 = por %p73, %p74
      %p76 = scmp.ne.s32.totalorder %s62, %s63
      %p77 = scmp.eq.s32.totalorder %s17, 3
      %p78 = por %p76, %p77
      %p80 = scmp.ne.s32.totalorder %s63, %s79
      %p81 = scmp.eq.s32.totalorder %s17, 0
      %p82 = por %p80, %p81
      %s83 = ssub.s32 %s18, %s30
      %s84 = ssub.s32 %s19, %s26
      %s85 = sor.u32 %s83, %s84
      %p86 = scmp.eq.s32.totalorder %s85, 0
      %s88 = sadd.s32 %s87, 1
      %s89 = scalar_select %p86, %s87, %s88
      %p92 = pneg %p86
      %p93 = scmp.eq.s32.totalorder %s11, 3
      %p94 = por %p92, %p93
      %p95 = scmp.ne.s32.totalorder %s87, %s90
      %p96 = scmp.eq.s32.totalorder %s11, 0
      %p97 = por %p95, %p96
      %p98 = scmp.ne.s32.totalorder %s87, %s90
      %p99 = scmp.eq.s32.totalorder %s16, 3
      %p100 = por %p98, %p99
      %p101 = scmp.ne.s32.totalorder %s90, %s91
      %p102 = scmp.eq.s32.totalorder %s16, 0
      %p103 = por %p101, %p102
      %p104 = scmp.ne.s32.totalorder %s90, %s91
      %p105 = scmp.eq.s32.totalorder %s17, 3
      %p106 = por %p104, %p105
      %p108 = scmp.ne.s32.totalorder %s91, %s107
      %p109 = scmp.eq.s32.totalorder %s17, 0
      %p110 = por %p108, %p109
      %p111 = scmp.le.s32.totalorder 1, %s11
      %p112 = scmp.lt.s32.totalorder %s11, 5
      %p113 = pnand %p111, %p112
      %p114 = pneg %p113
      // Predicated region
      $region9: #{tpu_custom_call.1} parent=5 // pred_check
        _
      $region10: #{tpu_custom_call.1} parent=5 // pred_check_branch
        %116 = sbr.rel (%p113) target = $region12
      $region11: #{tpu_custom_call.1} parent=5 // pred_region
        %s117 = ssub.s32 %s11, 1
      $region12: #{tpu_custom_call.1} parent=5 // pred_fallthru
        _
      %p118 = scmp.lt.s32.totalorder %s11, 4
      // Predicated region
      $region13: #{tpu_custom_call.1} parent=5 // pred_check
        %p119 = pneg %p118
      $region14: #{tpu_custom_call.1} parent=5 // pred_check_branch
        %121 = sbr.rel (%p119) target = $region16
      $region15: #{tpu_custom_call.1} parent=5 // pred_region
        // Predicated region
        $region17: #{tpu_custom_call.1} parent=15 // pred_check
          %p122 = pneg %p43
        $region18: #{tpu_custom_call.1} parent=15 // pred_check_branch
          %124 = sbr.rel (%p122) target = $region20
        $region19: #{tpu_custom_call.1} parent=15 // pred_region
          %s125 = smul.u32 16, %s18
          %p126 = scmp.lt.s32.totalorder %s125, 31
          %s127 = scalar_select %p126, %s125, 31
          %s128 = smul.addr %s127, 8
          %s129 = scalar_lea.vmem %s0, %s128
          %s130 = smul.u32 16, %s18
        $region20: #{tpu_custom_call.1} parent=15 // pred_fallthru
          _
        // Predicated region
        $region21: #{tpu_custom_call.1} parent=15 // pred_check
          %p131 = pneg %p69
        $region22: #{tpu_custom_call.1} parent=15 // pred_check_branch
          %133 = sbr.rel (%p131) target = $region24
        $region23: #{tpu_custom_call.1} parent=15 // pred_region
          %s134 = smul.u32 16, %s19
          %p135 = scmp.lt.s32.totalorder %s134, 31
          %s136 = scalar_select %p135, %s134, 31
          %s137 = smul.addr %s136, 8
          %s138 = scalar_lea.vmem %s1, %s137
          %s139 = smul.u32 16, %s19
        $region24: #{tpu_custom_call.1} parent=15 // pred_fallthru
          _
      $region16: #{tpu_custom_call.1} parent=5 // pred_fallthru
        _
      %p140 = scmp.le.s32.totalorder 1, %s11
      %p141 = scmp.lt.s32.totalorder %s11, 5
      %p142 = pnand %p140, %p141
      %p143 = pneg %p142
      // Predicated region
      $region25: #{tpu_custom_call.1} parent=5 // pred_check
        _
      $region26: #{tpu_custom_call.1} parent=5 // pred_check_branch
        %145 = sbr.rel (%p142) target = $region28
      $region27: #{tpu_custom_call.1} parent=5 // pred_region
        %s146 = ssub.s32 %s11, 1
        %s147 = smul.u32 16, %s20
        %p148 = scmp.lt.s32.totalorder %s147, 31
        %s149 = scalar_select %p148, %s147, 31
        %s150 = smul.addr %s149, 8
        %s151 = scalar_lea.vmem %s0, %s150
        %p152 = pneg %p49
        %p153 = pneg %p46
        %s154 = smul.u32 16, %s21
        %p155 = scmp.lt.s32.totalorder %s154, 31
        %s156 = scalar_select %p155, %s154, 31
        %s157 = smul.addr %s156, 8
        %s158 = scalar_lea.vmem %s1, %s157
        %p159 = pneg %p75
        %p160 = pneg %p72
        %p161 = pneg %p103
        %p162 = pneg %p100
        %s163 = sand.u32 %s90, 1
        %s164 = scalar_lea.sflag [#allocation3], %s163
        %s165 = sand.u32 %s90, 1
        %s166 = smul.addr %s165, 128
        %s167 = scalar_lea.vmem [#allocation2], %s166
        %s168 = smul.u32 16, %s20
        %p169 = scmp.lt.s32.totalorder %s168, 31
        %s170 = scalar_select %p169, %s168, 31
        %s171 = smul.addr %s170, 8
        %s172 = scalar_lea.vmem %s0, %s171
        %s173 = smul.u32 16, %s20
        %s174 = smul.u32 16, %s21
        %p175 = scmp.lt.s32.totalorder %s174, 31
        %s176 = scalar_select %p175, %s174, 31
        %s177 = smul.addr %s176, 8
        %s178 = scalar_lea.vmem %s1, %s177
        %s179 = smul.u32 16, %s21
        %s180 = smul.u32 16, %s20
        %v181 = vld [vmem:[%s172] sm:$0xff]
        %v182 = vld [vmem:[%s172 + $0x8] sm:$0xff]
        %v183 = vld [vmem:[%s172 + $0x10] sm:$0xff]
        %v184 = vld [vmem:[%s172 + $0x18] sm:$0xff]
        %v185 = vld [vmem:[%s172 + $0x20] sm:$0xff]
        %v186 = vld [vmem:[%s172 + $0x28] sm:$0xff]
        %v187 = vld [vmem:[%s172 + $0x30] sm:$0xff]
        %v188 = vld [vmem:[%s172 + $0x38] sm:$0xff]
        %v189 = vld [vmem:[%s172 + $0x40] sm:$0xff]
        %v190 = vld [vmem:[%s172 + $0x48] sm:$0xff]
        %v191 = vld [vmem:[%s172 + $0x50] sm:$0xff]
        %v192 = vld [vmem:[%s172 + $0x58] sm:$0xff]
        %v193 = vld [vmem:[%s172 + $0x60] sm:$0xff]
        %v194 = vld [vmem:[%s172 + $0x68] sm:$0xff]
        %v195 = vld [vmem:[%s172 + $0x70] sm:$0xff]
        %v196 = vld [vmem:[%s172 + $0x78] sm:$0xff]
        %v197 = vld [vmem:[%s178] sm:$0xff]
        %v198 = vld [vmem:[%s178 + $0x8] sm:$0xff]
        %v199 = vld [vmem:[%s178 + $0x10] sm:$0xff]
        %v200 = vld [vmem:[%s178 + $0x18] sm:$0xff]
        %v201 = vld [vmem:[%s178 + $0x20] sm:$0xff]
        %v202 = vld [vmem:[%s178 + $0x28] sm:$0xff]
        %v203 = vld [vmem:[%s178 + $0x30] sm:$0xff]
        %v204 = vld [vmem:[%s178 + $0x38] sm:$0xff]
        %v205 = vld [vmem:[%s178 + $0x40] sm:$0xff]
        %v206 = vld [vmem:[%s178 + $0x48] sm:$0xff]
        %v207 = vld [vmem:[%s178 + $0x50] sm:$0xff]
        %v208 = vld [vmem:[%s178 + $0x58] sm:$0xff]
        %v209 = vld [vmem:[%s178 + $0x60] sm:$0xff]
        %v210 = vld [vmem:[%s178 + $0x68] sm:$0xff]
        %v211 = vld [vmem:[%s178 + $0x70] sm:$0xff]
        %v212 = vld [vmem:[%s178 + $0x78] sm:$0xff]
        %vm213 = vcmask 261120
        %v215 = vsel %vm213, %v181, 0
        %v218 = vsel %vm213, %v182, 0
        %v221 = vsel %vm213, %v183, 0
        %v224 = vsel %vm213, %v184, 0
        %v227 = vsel %vm213, %v185, 0
        %v230 = vsel %vm213, %v186, 0
        %v233 = vsel %vm213, %v187, 0
        %v236 = vsel %vm213, %v188, 0
        %v239 = vsel %vm213, %v189, 0
        %v242 = vsel %vm213, %v190, 0
        %v245 = vsel %vm213, %v191, 0
        %v248 = vsel %vm213, %v192, 0
        %v251 = vsel %vm213, %v193, 0
        %v254 = vsel %vm213, %v194, 0
        %v257 = vsel %vm213, %v195, 0
        %v260 = vsel %vm213, %v196, 0
        %v263 = vsel %vm213, %v197, 0
        %v266 = vsel %vm213, %v198, 0
        %v269 = vsel %vm213, %v199, 0
        %v272 = vsel %vm213, %v200, 0
        %v275 = vsel %vm213, %v201, 0
        %v278 = vsel %vm213, %v202, 0
        %v281 = vsel %vm213, %v203, 0
        %v284 = vsel %vm213, %v204, 0
        %v287 = vsel %vm213, %v205, 0
        %v290 = vsel %vm213, %v206, 0
        %v293 = vsel %vm213, %v207, 0
        %v296 = vsel %vm213, %v208, 0
        %v299 = vsel %vm213, %v209, 0
        %v302 = vsel %vm213, %v210, 0
        %v305 = vsel %vm213, %v211, 0
        %v308 = vsel %vm213, %v212, 0
        %310 = vmatprep.subr.mxu0 0.0
        %311 = vmatpush1.xpose.msra.mxu0 %v308
        %312 = vmatprep.subr.mxu0 0.0
        %313 = vmatpush1.xpose.msra.mxu0 %v305
        %314 = vmatprep.subr.mxu0 0.0
        %315 = vmatpush1.xpose.msra.mxu0 %v302
        %316 = vmatprep.subr.mxu0 0.0
        %317 = vmatpush1.xpose.msra.mxu0 %v299
        %318 = vmatprep.subr.mxu0 0.0
        %319 = vmatpush1.xpose.msra.mxu0 %v296
        %320 = vmatprep.subr.mxu0 0.0
        %321 = vmatpush1.xpose.msra.mxu0 %v293
        %322 = vmatprep.subr.mxu0 0.0
        %323 = vmatpush1.xpose.msra.mxu0 %v290
        %324 = vmatprep.subr.mxu0 0.0
        %325 = vmatpush1.xpose.msra.mxu0 %v287
        %326 = vmatprep.subr.mxu0 0.0
        %327 = vmatpush1.xpose.msra.mxu0 %v284
        %328 = vmatprep.subr.mxu0 0.0
        %329 = vmatpush1.xpose.msra.mxu0 %v281
        %330 = vmatprep.subr.mxu0 0.0
        %331 = vmatpush1.xpose.msra.mxu0 %v278
        %332 = vmatprep.subr.mxu0 0.0
        %333 = vmatpush1.xpose.msra.mxu0 %v275
        %334 = vmatprep.subr.mxu0 0.0
        %335 = vmatpush1.xpose.msra.mxu0 %v272
        %336 = vmatprep.subr.mxu0 0.0
        %337 = vmatpush1.xpose.msra.mxu0 %v269
        %338 = vmatprep.subr.mxu0 0.0
        %339 = vmatpush1.xpose.msra.mxu0 %v266
        %340 = vmatprep.subr.mxu0 0.0
        %341 = vmatpush1.xpose.msra.mxu0 %v263
        %342 = vmatprep.subr.mxu0 0.0
        %343 = vmatpush2.xpose.msra.mxu0 0.0
        %344 = vmatprep.subr.mxu0 0.0
        %345 = vmatpush2.xpose.msra.mxu0 0.0
        %346 = vmatprep.subr.mxu0 0.0
        %347 = vmatpush2.xpose.msra.mxu0 0.0
        %348 = vmatprep.subr.mxu0 0.0
        %349 = vmatpush2.xpose.msra.mxu0 0.0
        %350 = vmatprep.subr.mxu0 0.0
        %351 = vmatpush2.xpose.msra.mxu0 0.0
        %352 = vmatprep.subr.mxu0 0.0
        %353 = vmatpush2.xpose.msra.mxu0 0.0
        %354 = vmatprep.subr.mxu0 0.0
        %355 = vmatpush2.xpose.msra.mxu0 0.0
        %356 = vmatprep.subr.mxu0 0.0
        %357 = vmatpush2.xpose.msra.mxu0 0.0
        %358 = vmatprep.subr.mxu0 0.0
        %359 = vmatpush2.xpose.msra.mxu0 0.0
        %360 = vmatprep.subr.mxu0 0.0
        %361 = vmatpush2.xpose.msra.mxu0 0.0
        %362 = vmatprep.subr.mxu0 0.0
        %363 = vmatpush2.xpose.msra.mxu0 0.0
        %364 = vmatprep.subr.mxu0 0.0
        %365 = vmatpush2.xpose.msra.mxu0 0.0
        %366 = vmatprep.subr.mxu0 0.0
        %367 = vmatpush2.xpose.msra.mxu0 0.0
        %368 = vmatprep.subr.mxu0 0.0
        %369 = vmatpush2.xpose.msra.mxu0 0.0
        %370 = vmatprep.subr.mxu0 0.0
        %371 = vmatpush2.xpose.msra.mxu0 0.0
        %372 = vmatprep.subr.mxu0 0.0
        %373 = vmatpush2.xpose.msra.mxu0 0.0
        %374 = vmatprep.mubr.f32.mxu0 0.0
        %375 = vmatmul.mubr.f32.gmra.mxu0 %v215
        %v376 = vpop.f32.mrf.mxu0
        %v377 = vadd.f32 0.0, %v376
        %v378 = vpop.f32.mrf.mxu0
        %379 = vmatprep.mubr.f32.mxu0 0.0
        %380 = vmatmul.mubr.f32.gmra.mxu0 %v218
        %v381 = vpop.f32.mrf.mxu0
        %v382 = vadd.f32 0.0, %v381
        %v383 = vpop.f32.mrf.mxu0
        %384 = vmatprep.mubr.f32.mxu0 0.0
        %385 = vmatmul.mubr.f32.gmra.mxu0 %v221
        %v386 = vpop.f32.mrf.mxu0
        %v387 = vadd.f32 0.0, %v386
        %v388 = vpop.f32.mrf.mxu0
        %389 = vmatprep.mubr.f32.mxu0 0.0
        %390 = vmatmul.mubr.f32.gmra.mxu0 %v224
        %v391 = vpop.f32.mrf.mxu0
        %v392 = vadd.f32 0.0, %v391
        %v393 = vpop.f32.mrf.mxu0
        %394 = vmatprep.mubr.f32.mxu0 0.0
        %395 = vmatmul.mubr.f32.gmra.mxu0 %v227
        %v396 = vpop.f32.mrf.mxu0
        %v397 = vadd.f32 0.0, %v396
        %v398 = vpop.f32.mrf.mxu0
        %399 = vmatprep.mubr.f32.mxu0 0.0
        %400 = vmatmul.mubr.f32.gmra.mxu0 %v230
        %v401 = vpop.f32.mrf.mxu0
        %v402 = vadd.f32 0.0, %v401
        %v403 = vpop.f32.mrf.mxu0
        %404 = vmatprep.mubr.f32.mxu0 0.0
        %405 = vmatmul.mubr.f32.gmra.mxu0 %v233
        %v406 = vpop.f32.mrf.mxu0
        %v407 = vadd.f32 0.0, %v406
        %v408 = vpop.f32.mrf.mxu0
        %409 = vmatprep.mubr.f32.mxu0 0.0
        %410 = vmatmul.mubr.f32.gmra.mxu0 %v236
        %v411 = vpop.f32.mrf.mxu0
        %v412 = vadd.f32 0.0, %v411
        %v413 = vpop.f32.mrf.mxu0
        %414 = vmatprep.mubr.f32.mxu0 0.0
        %415 = vmatmul.mubr.f32.gmra.mxu0 %v239
        %v416 = vpop.f32.mrf.mxu0
        %v417 = vadd.f32 0.0, %v416
        %v418 = vpop.f32.mrf.mxu0
        %419 = vmatprep.mubr.f32.mxu0 0.0
        %420 = vmatmul.mubr.f32.gmra.mxu0 %v242
        %v421 = vpop.f32.mrf.mxu0
        %v422 = vadd.f32 0.0, %v421
        %v423 = vpop.f32.mrf.mxu0
        %424 = vmatprep.mubr.f32.mxu0 0.0
        %425 = vmatmul.mubr.f32.gmra.mxu0 %v245
        %v426 = vpop.f32.mrf.mxu0
        %v427 = vadd.f32 0.0, %v426
        %v428 = vpop.f32.mrf.mxu0
        %429 = vmatprep.mubr.f32.mxu0 0.0
        %430 = vmatmul.mubr.f32.gmra.mxu0 %v248
        %v431 = vpop.f32.mrf.mxu0
        %v432 = vadd.f32 0.0, %v431
        %v433 = vpop.f32.mrf.mxu0
        %434 = vmatprep.mubr.f32.mxu0 0.0
        %435 = vmatmul.mubr.f32.gmra.mxu0 %v251
        %v436 = vpop.f32.mrf.mxu0
        %v437 = vadd.f32 0.0, %v436
        %v438 = vpop.f32.mrf.mxu0
        %439 = vmatprep.mubr.f32.mxu0 0.0
        %440 = vmatmul.mubr.f32.gmra.mxu0 %v254
        %v441 = vpop.f32.mrf.mxu0
        %v442 = vadd.f32 0.0, %v441
        %v443 = vpop.f32.mrf.mxu0
        %444 = vmatprep.mubr.f32.mxu0 0.0
        %445 = vmatmul.mubr.f32.gmra.mxu0 %v257
        %v446 = vpop.f32.mrf.mxu0
        %v447 = vadd.f32 0.0, %v446
        %v448 = vpop.f32.mrf.mxu0
        %449 = vmatprep.mubr.f32.mxu0 0.0
        %450 = vmatmul.mubr.f32.gmra.mxu0 %v260
        %v451 = vpop.f32.mrf.mxu0
        %v452 = vadd.f32 0.0, %v451
        %v453 = vpop.f32.mrf.mxu0
        %454 = vdwg.mxu0
        %v455 = vxor.u32 %v377, 2147483648
        %v456 = vxor.u32 %v382, 2147483648
        %v457 = vxor.u32 %v387, 2147483648
        %v458 = vxor.u32 %v392, 2147483648
        %v459 = vxor.u32 %v397, 2147483648
        %v460 = vxor.u32 %v402, 2147483648
        %v461 = vxor.u32 %v407, 2147483648
        %v462 = vxor.u32 %v412, 2147483648
        %v463 = vxor.u32 %v417, 2147483648
        %v464 = vxor.u32 %v422, 2147483648
        %v465 = vxor.u32 %v427, 2147483648
        %v466 = vxor.u32 %v432, 2147483648
        %v467 = vxor.u32 %v437, 2147483648
        %v468 = vxor.u32 %v442, 2147483648
        %v469 = vxor.u32 %v447, 2147483648
        %v470 = vxor.u32 %v452, 2147483648
        %v471 = vmul.f32 %v455, 1.442695
        %v472 = vpow.pop %v471
        %v473 = vmul.f32 %v456, 1.442695
        %v474 = vpow.pop %v473
        %v475 = vmul.f32 %v457, 1.442695
        %v476 = vpow.pop %v475
        %v477 = vmul.f32 %v458, 1.442695
        %v478 = vpow.pop %v477
        %v479 = vmul.f32 %v459, 1.442695
        %v480 = vpow.pop %v479
        %v481 = vmul.f32 %v460, 1.442695
        %v482 = vpow.pop %v481
        %v483 = vmul.f32 %v461, 1.442695
        %v484 = vpow.pop %v483
        %v485 = vmul.f32 %v462, 1.442695
        %v486 = vpow.pop %v485
        %v487 = vmul.f32 %v463, 1.442695
        %v488 = vpow.pop %v487
        %v489 = vmul.f32 %v464, 1.442695
        %v490 = vpow.pop %v489
        %v491 = vmul.f32 %v465, 1.442695
        %v492 = vpow.pop %v491
        %v493 = vmul.f32 %v466, 1.442695
        %v494 = vpow.pop %v493
        %v495 = vmul.f32 %v467, 1.442695
        %v496 = vpow.pop %v495
        %v497 = vmul.f32 %v468, 1.442695
        %v498 = vpow.pop %v497
        %v499 = vmul.f32 %v469, 1.442695
        %v500 = vpow.pop %v499
        %v501 = vmul.f32 %v470, 1.442695
        %v502 = vpow.pop %v501
        %v503 = vadd.f32 %v472, 1.0
        %v504 = vadd.f32 %v474, 1.0
        %v505 = vadd.f32 %v476, 1.0
        %v506 = vadd.f32 %v478, 1.0
        %v507 = vadd.f32 %v480, 1.0
        %v508 = vadd.f32 %v482, 1.0
        %v509 = vadd.f32 %v484, 1.0
        %v510 = vadd.f32 %v486, 1.0
        %v511 = vadd.f32 %v488, 1.0
        %v512 = vadd.f32 %v490, 1.0
        %v513 = vadd.f32 %v492, 1.0
        %v514 = vadd.f32 %v494, 1.0
        %v515 = vadd.f32 %v496, 1.0
        %v516 = vadd.f32 %v498, 1.0
        %v517 = vadd.f32 %v500, 1.0
        %v518 = vadd.f32 %v502, 1.0
        %v519 = vrcp.pop %v503
        %v520 = vmul.f32 1.0, %v519
        %v521 = vrcp.pop %v504
        %v522 = vmul.f32 1.0, %v521
        %v523 = vrcp.pop %v505
        %v524 = vmul.f32 1.0, %v523
        %v525 = vrcp.pop %v506
        %v526 = vmul.f32 1.0, %v525
        %v527 = vrcp.pop %v507
        %v528 = vmul.f32 1.0, %v527
        %v529 = vrcp.pop %v508
        %v530 = vmul.f32 1.0, %v529
        %v531 = vrcp.pop %v509
        %v532 = vmul.f32 1.0, %v531
        %v533 = vrcp.pop %v510
        %v534 = vmul.f32 1.0, %v533
        %v535 = vrcp.pop %v511
        %v536 = vmul.f32 1.0, %v535
        %v537 = vrcp.pop %v512
        %v538 = vmul.f32 1.0, %v537
        %v539 = vrcp.pop %v513
        %v540 = vmul.f32 1.0, %v539
        %v541 = vrcp.pop %v514
        %v542 = vmul.f32 1.0, %v541
        %v543 = vrcp.pop %v515
        %v544 = vmul.f32 1.0, %v543
        %v545 = vrcp.pop %v516
        %v546 = vmul.f32 1.0, %v545
        %v547 = vrcp.pop %v517
        %v548 = vmul.f32 1.0, %v547
        %v549 = vrcp.pop %v518
        %v550 = vmul.f32 1.0, %v549
        %551 = vst [vmem:[%s167] sm:$0xff] %v520
        %552 = vst [vmem:[%s167 + $0x8] sm:$0xff] %v522
        %553 = vst [vmem:[%s167 + $0x10] sm:$0xff] %v524
        %554 = vst [vmem:[%s167 + $0x18] sm:$0xff] %v526
        %555 = vst [vmem:[%s167 + $0x20] sm:$0xff] %v528
        %556 = vst [vmem:[%s167 + $0x28] sm:$0xff] %v530
        %557 = vst [vmem:[%s167 + $0x30] sm:$0xff] %v532
        %558 = vst [vmem:[%s167 + $0x38] sm:$0xff] %v534
        %559 = vst [vmem:[%s167 + $0x40] sm:$0xff] %v536
        %560 = vst [vmem:[%s167 + $0x48] sm:$0xff] %v538
        %561 = vst [vmem:[%s167 + $0x50] sm:$0xff] %v540
        %562 = vst [vmem:[%s167 + $0x58] sm:$0xff] %v542
        %563 = vst [vmem:[%s167 + $0x60] sm:$0xff] %v544
        %564 = vst [vmem:[%s167 + $0x68] sm:$0xff] %v546
        %565 = vst [vmem:[%s167 + $0x70] sm:$0xff] %v548
        %566 = vst [vmem:[%s167 + $0x78] sm:$0xff] %v550
        %s567 = sand.u32 %s90, 1
        %s568 = scalar_lea.sflag [#allocation3], %s567
        %s569 = sand.u32 %s90, 1
        %s570 = smul.addr %s569, 128
        %s571 = scalar_lea.vmem [#allocation2], %s570
        // Predicated region
        $region29: #{tpu_custom_call.1} parent=27 // pred_check
          %p572 = pneg %p100
        $region30: #{tpu_custom_call.1} parent=27 // pred_check_branch
          %574 = sbr.rel (%p572) target = $region32
        $region31: #{tpu_custom_call.1} parent=27 // pred_region
          %s575 = smul.u32 16, %s20
          %s577 = ssub.s32 2048, 2048
          %578 = vsyncadd %s568, %s577
          %s579 = smul.addr %s575, 2
          %s580 = sadd.s32 %s21, %s579
          %s581 = smul.addr %s580, 128
          %s582 = scalar_lea.hbm %s2, %s581
          %s583 = sshll.u32 %s571, 4
          %s584 = int_to_ptr.vmem [resolvable:$true] %s583
          %589 = dma.vmem_to_hbm [thread:$0]  %s584, 2048, %s582, %s568, 128, 256, 8
        $region32: #{tpu_custom_call.1} parent=27 // pred_fallthru
          _
      $region28: #{tpu_custom_call.1} parent=5 // pred_fallthru
        _
      %p590 = scmp.le.s32.totalorder 2, %s11
      // Predicated region
      $region33: #{tpu_custom_call.1} parent=5 // pred_check
        %p591 = pneg %p590
      $region34: #{tpu_custom_call.1} parent=5 // pred_check_branch
        %593 = sbr.rel (%p591) target = $region36
      $region35: #{tpu_custom_call.1} parent=5 // pred_region
        %s594 = ssub.s32 %s11, 2
        // Predicated region
        $region37: #{tpu_custom_call.1} parent=35 // pred_check
          %p595 = pneg %p106
        $region38: #{tpu_custom_call.1} parent=35 // pred_check_branch
          %597 = sbr.rel (%p595) target = $region40
        $region39: #{tpu_custom_call.1} parent=35 // pred_region
          %s598 = sand.u32 %s91, 1
          %s599 = scalar_lea.sflag [#allocation3], %s598
          %s600 = sand.u32 %s91, 1
          %s601 = smul.addr %s600, 128
          %s602 = scalar_lea.vmem [#allocation2], %s601
          %603 = dma.done %s599, 2048
        $region40: #{tpu_custom_call.1} parent=35 // pred_fallthru
          _
      $region36: #{tpu_custom_call.1} parent=5 // pred_fallthru
        _
    $region6: #{tpu_custom_call.1} parent=1 // loop_footer
      %s15 = sadd.s32 1, %s11
    $region7: #{tpu_custom_call.1} parent=1 // loop_footer_branch
      %10 = sbr.rel target = $region3
    $region8: #{tpu_custom_call.1} parent=1 // loop_exit
      _
    %604 = vsyncpa [#allocation3], 1
    %s605 = scalar_lea.sflag [#allocation3], 1
    %606 = vsyncpa %s605, 1

</llo_original>
